<compile_context>
chip_gen: v7x
topology: tpu7x:2x2x1
jax: 0.10.0
libtpu: 0.0.40
codegen_flags: <defaults>
</compile_context>

<pallas_src>
import functools

import jax
import jax.numpy as jnp
from jax.experimental import pallas as pl
from jax.experimental.pallas import tpu as pltpu

BN_EPS = 1e-5
LANE = 128


def _round_up(n, m):
    return ((n + m - 1) // m) * m


def _make_fused_mlp_kernel(num_hidden):
    """Build a fused kernel for: num_hidden x (Linear->ReLU->BN) -> Linear+bias.

    Ref layout: x, (w, gamma, beta) * num_hidden, w_out, b_out, o
    """

    def kernel(*refs):
        x_ref = refs[0]
        o_ref = refs[-1]

        # x already arrives as bf16 (cast in the wrapper); MXU operands bf16,
        # accumulation f32 via preferred_element_type.
        h = x_ref[...]

        idx = 1
        for _ in range(num_hidden):
            w_ref, g_ref, be_ref = refs[idx], refs[idx + 1], refs[idx + 2]
            idx += 3

            z = jnp.dot(h, w_ref[...], preferred_element_type=jnp.float32)
            z = jnp.maximum(z, 0.0)

            # BatchNorm1d (training mode): batch mean / biased variance, all f32
            # (v5e has no bf16 VALU/EUP; keep elementwise math f32).
            mean = jnp.mean(z, axis=0, keepdims=True)
            centered = z - mean
            var = jnp.mean(centered * centered, axis=0, keepdims=True)
            scale = jax.lax.rsqrt(var + BN_EPS) * g_ref[...]   # fold gamma
            z = centered * scale + be_ref[...]

            h = z.astype(jnp.bfloat16)

        w_out_ref, bias_ref = refs[idx], refs[idx + 1]
        out = jnp.dot(h, w_out_ref[...], preferred_element_type=jnp.float32)
        o_ref[...] = out + bias_ref[...]

    return kernel


def init_mlp_params(key, input_dim, output_dim, layers, gain=0.01):
    """Deterministic synthetic parameter init (shapes follow nn.Linear / BN1d).

    Linear weights are stored transposed as (in, out) and cast to bf16 for the
    MXU; BN gamma/beta and the output bias stay f32. The output weight/bias are
    zero-padded to a 128-lane multiple HERE (once), so the kernel's final store
    is an unmasked lane-dense vst and the forward pass does no per-call pad.
    """
    params = {"hidden": [], "out": None, "out_dim": output_dim}
    curr = input_dim
    for layer_dim in layers:
        key, kw = jax.random.split(key)
        bound = 1.0 / jnp.sqrt(curr)
        w = jax.random.uniform(kw, (curr, layer_dim), jnp.float32, -bound, bound)
        gamma = jnp.ones((1, layer_dim), jnp.float32)   # BN weight default
        beta = jnp.zeros((1, layer_dim), jnp.float32)   # BN bias default
        params["hidden"].append((w.astype(jnp.bfloat16), gamma, beta))
        curr = layer_dim
    # Output layer: xavier-uniform with gain (weight), default uniform bias.
    key, kw, kb = jax.random.split(key, 3)
    limit = gain * jnp.sqrt(6.0 / (curr + output_dim))
    w_out = jax.random.uniform(kw, (curr, output_dim), jnp.float32, -limit, limit)
    b_out = jax.random.uniform(kb, (1, output_dim), jnp.float32,
                               -1.0 / jnp.sqrt(curr), 1.0 / jnp.sqrt(curr))
    padded_out = _round_up(output_dim, LANE)
    pad = padded_out - output_dim
    if pad:
        w_out = jnp.pad(w_out, ((0, 0), (0, pad)))
        b_out = jnp.pad(b_out, ((0, 0), (0, pad)))
    params["out"] = (w_out.astype(jnp.bfloat16), b_out)
    return params


@functools.partial(jax.jit, static_argnames=("out_dim", "flatten"))
def _mlp_forward_padded(x, params, out_dim, flatten=True):
    B = x.shape[0]
    h = x.reshape(B, -1) if flatten else x
    # bf16 input: halves the x DMA, matches the MXU operand dtype directly.
    h = h.astype(jnp.bfloat16)

    hidden = params["hidden"]
    w_out_p, b_out_p = params["out"]          # already lane-padded at init
    padded_out = w_out_p.shape[1]

    inputs = [h]
    dims = [h.shape[1]]
    for (w, g, be) in hidden:
        inputs += [w, g, be]
        dims.append(w.shape[1])
    inputs += [w_out_p, b_out_p]
    dims.append(padded_out)

    # Cost estimate: matmul flops + BN rsqrt transcendentals + honest I/O bytes.
    flops = sum(2 * B * dims[i] * dims[i + 1] for i in range(len(dims) - 1))
    transcendentals = sum(w.shape[1] for (w, _, _) in hidden)
    bytes_accessed = sum(a.size * a.dtype.itemsize for a in inputs)
    bytes_accessed += B * padded_out * 4
    ce = pl.CostEstimate(flops=flops,
                         transcendentals=transcendentals,
                         bytes_accessed=bytes_accessed)

    # VMEM budget: everything resident (inputs + output) plus an estimate of
    # the live f32/bf16 intermediates, with ~2x headroom; clamp to v7x's 64 MiB
    # physical so the request is always satisfiable on every generation.
    max_width = max(dims)
    resident = sum(a.size * a.dtype.itemsize for a in inputs)
    resident += B * padded_out * 4                 # output block
    resident += 4 * B * max_width * 4              # live intermediates (f32)
    vmem_limit = min(64 << 20, max(1 << 20, int(resident * 2)))

    kernel = _make_fused_mlp_kernel(len(hidden))
    vmem = pl.BlockSpec(memory_space=pltpu.VMEM)

    out = pl.pallas_call(
        kernel,
        out_shape=jax.ShapeDtypeStruct((B, padded_out), jnp.float32),
        in_specs=[vmem] * len(inputs),
        out_specs=vmem,
        cost_estimate=ce,
        compiler_params=pltpu.CompilerParams(vmem_limit_bytes=vmem_limit),
    )(*inputs)

    # Slice the lane-padded output back to the true output_dim.
    return out[:, :out_dim]


def mlp_forward(x, params, flatten=True):
    return _mlp_forward_padded(x, params, params["out_dim"], flatten)


if __name__ == "__main__":
    key = jax.random.PRNGKey(0)
    k_x, k_p = jax.random.split(key)

    # Small input consistent with flatten=True usage: NCHW image-like tensor.
    B, C, H, W = 2, 4, 16, 16
    x = jax.random.normal(k_x, (B, C, H, W), jnp.float32)

    input_dim = C * H * W          # 1024
    layers = [128, 128]            # hidden layers
    output_dim = 64

    params = init_mlp_params(k_p, input_dim, output_dim, layers, gain=0.01)

    out = mlp_forward(x, params, flatten=True)
    jax.block_until_ready(out)

    assert out.shape == (B, output_dim), out.shape
    assert bool(jnp.all(jnp.isfinite(out)))
    print("KERNEL_OK")
</pallas_src>

<mosaic_0001>
module attributes {stable_mosaic.version = 11 : i64} {
  func.func @kernel(%arg0: memref<2x1024xbf16, #tpu.memory_space<vmem>>, %arg1: memref<1024x128xbf16, #tpu.memory_space<vmem>>, %arg2: memref<1x128xf32, #tpu.memory_space<vmem>>, %arg3: memref<1x128xf32, #tpu.memory_space<vmem>>, %arg4: memref<128x128xbf16, #tpu.memory_space<vmem>>, %arg5: memref<1x128xf32, #tpu.memory_space<vmem>>, %arg6: memref<1x128xf32, #tpu.memory_space<vmem>>, %arg7: memref<128x128xbf16, #tpu.memory_space<vmem>>, %arg8: memref<1x128xf32, #tpu.memory_space<vmem>>, %arg9: memref<2x128xf32, #tpu.memory_space<vmem>>) attributes {dimension_semantics = [], scalar_prefetch = 0 : i64, scratch_operands = 0 : i64, tpu.core_type = #tpu.core_type<tc>} {
    %c0 = arith.constant 0 : index
    %c0_0 = arith.constant 0 : index
    %0 = vector.load %arg0[%c0, %c0_0] : memref<2x1024xbf16, #tpu.memory_space<vmem>>, vector<2x1024xbf16>
    %c0_1 = arith.constant 0 : index
    %c0_2 = arith.constant 0 : index
    %1 = vector.load %arg1[%c0_1, %c0_2] : memref<1024x128xbf16, #tpu.memory_space<vmem>>, vector<1024x128xbf16>
    %cst = arith.constant dense<0.000000e+00> : vector<2x128xf32>
    %2 = tpu.matmul %0, %1, %cst {dimension_numbers = #tpu.dot_dimension_numbers<[1], [0], [0], [1], [0, 0, 1, 1], [], []>} : vector<2x1024xbf16>, vector<1024x128xbf16>, vector<2x128xf32> -> vector<2x128xf32>
    %cst_3 = arith.constant 0.000000e+00 : f32
    %3 = vector.broadcast %cst_3 : f32 to vector<2x128xf32>
    %4 = arith.maximumf %2, %3 : vector<2x128xf32>
    %cst_4 = arith.constant dense<0.000000e+00> : vector<128xf32>
    %5 = vector.multi_reduction <add>, %4, %cst_4 [0] : vector<2x128xf32> to vector<128xf32>
    %6 = vector.shape_cast %5 : vector<128xf32> to vector<1x128xf32>
    %cst_5 = arith.constant 2.000000e+00 : f32
    %7 = vector.broadcast %cst_5 : f32 to vector<1x128xf32>
    %8 = arith.divf %6, %7 : vector<1x128xf32>
    %9 = vector.broadcast %8 : vector<1x128xf32> to vector<2x128xf32>
    %10 = arith.subf %4, %9 : vector<2x128xf32>
    %11 = arith.mulf %10, %10 : vector<2x128xf32>
    %cst_6 = arith.constant dense<0.000000e+00> : vector<128xf32>
    %12 = vector.multi_reduction <add>, %11, %cst_6 [0] : vector<2x128xf32> to vector<128xf32>
    %13 = vector.shape_cast %12 : vector<128xf32> to vector<1x128xf32>
    %cst_7 = arith.constant 2.000000e+00 : f32
    %14 = vector.broadcast %cst_7 : f32 to vector<1x128xf32>
    %15 = arith.divf %13, %14 : vector<1x128xf32>
    %cst_8 = arith.constant 9.99999974E-6 : f32
    %16 = vector.broadcast %cst_8 : f32 to vector<1x128xf32>
    %17 = arith.addf %15, %16 : vector<1x128xf32>
    %18 = math.rsqrt %17 : vector<1x128xf32>
    %c0_9 = arith.constant 0 : index
    %c0_10 = arith.constant 0 : index
    %19 = vector.load %arg2[%c0_9, %c0_10] : memref<1x128xf32, #tpu.memory_space<vmem>>, vector<1x128xf32>
    %20 = arith.mulf %18, %19 : vector<1x128xf32>
    %21 = vector.broadcast %20 : vector<1x128xf32> to vector<2x128xf32>
    %22 = arith.mulf %10, %21 : vector<2x128xf32>
    %c0_11 = arith.constant 0 : index
    %c0_12 = arith.constant 0 : index
    %23 = vector.load %arg3[%c0_11, %c0_12] : memref<1x128xf32, #tpu.memory_space<vmem>>, vector<1x128xf32>
    %24 = vector.broadcast %23 : vector<1x128xf32> to vector<2x128xf32>
    %25 = arith.addf %22, %24 : vector<2x128xf32>
    %26 = arith.truncf %25 : vector<2x128xf32> to vector<2x128xbf16>
    %c0_13 = arith.constant 0 : index
    %c0_14 = arith.constant 0 : index
    %27 = vector.load %arg4[%c0_13, %c0_14] : memref<128x128xbf16, #tpu.memory_space<vmem>>, vector<128x128xbf16>
    %cst_15 = arith.constant dense<0.000000e+00> : vector<2x128xf32>
    %28 = tpu.matmul %26, %27, %cst_15 {dimension_numbers = #tpu.dot_dimension_numbers<[1], [0], [0], [1], [0, 0, 1, 1], [], []>} : vector<2x128xbf16>, vector<128x128xbf16>, vector<2x128xf32> -> vector<2x128xf32>
    %cst_16 = arith.constant 0.000000e+00 : f32
    %29 = vector.broadcast %cst_16 : f32 to vector<2x128xf32>
    %30 = arith.maximumf %28, %29 : vector<2x128xf32>
    %cst_17 = arith.constant dense<0.000000e+00> : vector<128xf32>
    %31 = vector.multi_reduction <add>, %30, %cst_17 [0] : vector<2x128xf32> to vector<128xf32>
    %32 = vector.shape_cast %31 : vector<128xf32> to vector<1x128xf32>
    %cst_18 = arith.constant 2.000000e+00 : f32
    %33 = vector.broadcast %cst_18 : f32 to vector<1x128xf32>
    %34 = arith.divf %32, %33 : vector<1x128xf32>
    %35 = vector.broadcast %34 : vector<1x128xf32> to vector<2x128xf32>
    %36 = arith.subf %30, %35 : vector<2x128xf32>
    %37 = arith.mulf %36, %36 : vector<2x128xf32>
    %cst_19 = arith.constant dense<0.000000e+00> : vector<128xf32>
    %38 = vector.multi_reduction <add>, %37, %cst_19 [0] : vector<2x128xf32> to vector<128xf32>
    %39 = vector.shape_cast %38 : vector<128xf32> to vector<1x128xf32>
    %cst_20 = arith.constant 2.000000e+00 : f32
    %40 = vector.broadcast %cst_20 : f32 to vector<1x128xf32>
    %41 = arith.divf %39, %40 : vector<1x128xf32>
    %cst_21 = arith.constant 9.99999974E-6 : f32
    %42 = vector.broadcast %cst_21 : f32 to vector<1x128xf32>
    %43 = arith.addf %41, %42 : vector<1x128xf32>
    %44 = math.rsqrt %43 : vector<1x128xf32>
    %c0_22 = arith.constant 0 : index
    %c0_23 = arith.constant 0 : index
    %45 = vector.load %arg5[%c0_22, %c0_23] : memref<1x128xf32, #tpu.memory_space<vmem>>, vector<1x128xf32>
    %46 = arith.mulf %44, %45 : vector<1x128xf32>
    %47 = vector.broadcast %46 : vector<1x128xf32> to vector<2x128xf32>
    %48 = arith.mulf %36, %47 : vector<2x128xf32>
    %c0_24 = arith.constant 0 : index
    %c0_25 = arith.constant 0 : index
    %49 = vector.load %arg6[%c0_24, %c0_25] : memref<1x128xf32, #tpu.memory_space<vmem>>, vector<1x128xf32>
    %50 = vector.broadcast %49 : vector<1x128xf32> to vector<2x128xf32>
    %51 = arith.addf %48, %50 : vector<2x128xf32>
    %52 = arith.truncf %51 : vector<2x128xf32> to vector<2x128xbf16>
    %c0_26 = arith.constant 0 : index
    %c0_27 = arith.constant 0 : index
    %53 = vector.load %arg7[%c0_26, %c0_27] : memref<128x128xbf16, #tpu.memory_space<vmem>>, vector<128x128xbf16>
    %cst_28 = arith.constant dense<0.000000e+00> : vector<2x128xf32>
    %54 = tpu.matmul %52, %53, %cst_28 {dimension_numbers = #tpu.dot_dimension_numbers<[1], [0], [0], [1], [0, 0, 1, 1], [], []>} : vector<2x128xbf16>, vector<128x128xbf16>, vector<2x128xf32> -> vector<2x128xf32>
    %c0_29 = arith.constant 0 : index
    %c0_30 = arith.constant 0 : index
    %55 = vector.load %arg8[%c0_29, %c0_30] : memref<1x128xf32, #tpu.memory_space<vmem>>, vector<1x128xf32>
    %56 = vector.broadcast %55 : vector<1x128xf32> to vector<2x128xf32>
    %57 = arith.addf %54, %56 : vector<2x128xf32>
    %c0_31 = arith.constant 0 : index
    %c0_32 = arith.constant 0 : index
    %58 = vector.load %arg9[%c0_31, %c0_32] : memref<2x128xf32, #tpu.memory_space<vmem>>, vector<2x128xf32>
    tpu.vector_store %arg9[%c0_31, %c0_32], %57 {strides = array<i32>} : memref<2x128xf32, #tpu.memory_space<vmem>>, vector<2x128xf32>,
    return
  }
}

</mosaic_0001>

<llo_original>
// kernel: _mlp_forward_padded.1
$region0: #{_mlp_forward_padded.1}
  #allocation0 [shape = 'u32[]', space=smem, size = 0x4, offset = 0x4, fixed_abs, tag = 'smem constant byte address 0x4 - core index']
  #allocation1 [shape = 'u32[144,128]{1,0:T(1,128)}', space=vmem, size = 0x12000, scoped, tag = 'internal scratch']
  %s0 = inlined_call_operand.vmem [shape: bf16[2,1024], index: 0, kind: input, shape index: {}]
  %s1 = inlined_call_operand.hbm [shape: bf16[1024,128], index: 1, kind: input, shape index: {}]
  %s2 = inlined_call_operand.vmem [shape: f32[1,128], index: 2, kind: input, shape index: {}]
  %s3 = inlined_call_operand.vmem [shape: f32[1,128], index: 3, kind: input, shape index: {}]
  %s4 = inlined_call_operand.vmem [shape: bf16[128,128], index: 4, kind: input, shape index: {}]
  %s5 = inlined_call_operand.vmem [shape: f32[1,128], index: 5, kind: input, shape index: {}]
  %s6 = inlined_call_operand.vmem [shape: f32[1,128], index: 6, kind: input, shape index: {}]
  %s7 = inlined_call_operand.vmem [shape: bf16[128,128], index: 7, kind: input, shape index: {}]
  %s8 = inlined_call_operand.vmem [shape: f32[1,128], index: 8, kind: input, shape index: {}]
  %s9 = inlined_call_operand.hbm [shape: f32[2,128], index: 9, kind: output, shape index: {}]
  %s10 = sld [smem:[#allocation0]]
  $region50: #{_mlp_forward_padded.1} parent=0
    _
  %s12 = ssub.s32 1, %s10
  %s13 = scalar_select 0, %s12, %s10
  $region1: #{_mlp_forward_padded.1} parent=0
    #allocation2 [shape = 'u8[262144]{0}', space=vmem, size = 0x40000, scoped, tag = 'input window, operand 1, single buffered']
    #allocation3 [shape = 's32[1]{0}', space=sflag, size = 0x4, scoped, tag = 'scoped memory for _mlp_forward_padded.1']
    #allocation4 [shape = 's32[1]{0}', space=sflag, size = 0x4, scoped, tag = 'scoped memory for _mlp_forward_padded.1']
    #allocation5 [shape = 'u8[1024]{0}', space=vmem, size = 0x400, scoped, tag = 'output window, operand 0, single buffered']
    %14 = vsyncpa [#allocation3], 0
    %15 = vsyncpa [#allocation4], 0
    // Predicated region
    $region2: #{_mlp_forward_padded.1} parent=1 // pred_check
      _
    $region3: #{_mlp_forward_padded.1} parent=1 // pred_check_branch
      %17 = sbr.rel (0) target = $region5
    $region4: #{_mlp_forward_padded.1} parent=1 // pred_region
      _
    $region5: #{_mlp_forward_padded.1} parent=1 // pred_fallthru
      _
    // Predicated region
    $region6: #{_mlp_forward_padded.1} parent=1 // pred_check
      _
    $region7: #{_mlp_forward_padded.1} parent=1 // pred_check_branch
      %19 = sbr.rel (0) target = $region9
    $region8: #{_mlp_forward_padded.1} parent=1 // pred_region
      %s21 = ssub.s32 8192, 8192
      %22 = vsyncadd [#allocation3], %s21
      %s23 = sshll.u32 [#allocation2], 4
      %s24 = int_to_ptr.vmem [resolvable:$true] %s23
      %29 = dma.hbm_to_vmem [thread:$0]  %s1, 8192, %s24, [#allocation3], 64, 64, 4
    $region9: #{_mlp_forward_padded.1} parent=1 // pred_fallthru
      _
    // Predicated region
    $region10: #{_mlp_forward_padded.1} parent=1 // pred_check
      _
    $region11: #{_mlp_forward_padded.1} parent=1 // pred_check_branch
      %31 = sbr.rel (0) target = $region13
    $region12: #{_mlp_forward_padded.1} parent=1 // pred_region
      _
    $region13: #{_mlp_forward_padded.1} parent=1 // pred_fallthru
      _
    // Predicated region
    $region14: #{_mlp_forward_padded.1} parent=1 // pred_check
      _
    $region15: #{_mlp_forward_padded.1} parent=1 // pred_check_branch
      %33 = sbr.rel (0) target = $region17
    $region16: #{_mlp_forward_padded.1} parent=1 // pred_region
      _
    $region17: #{_mlp_forward_padded.1} parent=1 // pred_fallthru
      _
    // Predicated region
    $region18: #{_mlp_forward_padded.1} parent=1 // pred_check
      _
    $region19: #{_mlp_forward_padded.1} parent=1 // pred_check_branch
      %35 = sbr.rel (0) target = $region21
    $region20: #{_mlp_forward_padded.1} parent=1 // pred_region
      _
    $region21: #{_mlp_forward_padded.1} parent=1 // pred_fallthru
      _
    // Predicated region
    $region22: #{_mlp_forward_padded.1} parent=1 // pred_check
      _
    $region23: #{_mlp_forward_padded.1} parent=1 // pred_check_branch
      %37 = sbr.rel (0) target = $region25
    $region24: #{_mlp_forward_padded.1} parent=1 // pred_region
      _
    $region25: #{_mlp_forward_padded.1} parent=1 // pred_fallthru
      _
    // Predicated region
    $region26: #{_mlp_forward_padded.1} parent=1 // pred_check
      _
    $region27: #{_mlp_forward_padded.1} parent=1 // pred_check_branch
      %39 = sbr.rel (0) target = $region29
    $region28: #{_mlp_forward_padded.1} parent=1 // pred_region
      _
    $region29: #{_mlp_forward_padded.1} parent=1 // pred_fallthru
      _
    // Predicated region
    $region30: #{_mlp_forward_padded.1} parent=1 // pred_check
      _
    $region31: #{_mlp_forward_padded.1} parent=1 // pred_check_branch
      %41 = sbr.rel (0) target = $region33
    $region32: #{_mlp_forward_padded.1} parent=1 // pred_region
      _
    $region33: #{_mlp_forward_padded.1} parent=1 // pred_fallthru
      _
    // Predicated region
    $region34: #{_mlp_forward_padded.1} parent=1 // pred_check
      _
    $region35: #{_mlp_forward_padded.1} parent=1 // pred_check_branch
      %43 = sbr.rel (0) target = $region37
    $region36: #{_mlp_forward_padded.1} parent=1 // pred_region
      _
    $region37: #{_mlp_forward_padded.1} parent=1 // pred_fallthru
      _
    // Predicated region
    $region38: #{_mlp_forward_padded.1} parent=1 // pred_check
      _
    $region39: #{_mlp_forward_padded.1} parent=1 // pred_check_branch
      %45 = sbr.rel (0) target = $region41
    $region40: #{_mlp_forward_padded.1} parent=1 // pred_region
      %46 = dma.done [#allocation3], 8192
    $region41: #{_mlp_forward_padded.1} parent=1 // pred_fallthru
      _
    %v48 = vld [vmem:[%s0] sm:$0xff]
    %v49 = vld [vmem:[#allocation2] sm:$0xf]
    %v50 = vld [vmem:[#allocation2 + $0x4] sm:$0xf]
    %v51 = vld [vmem:[#allocation2 + $0x8] sm:$0xf]
    %v52 = vld [vmem:[#allocation2 + $0xc] sm:$0xf]
    %v53 = vld [vmem:[#allocation2 + $0x10] sm:$0xf]
    %v54 = vld [vmem:[#allocation2 + $0x14] sm:$0xf]
    %v55 = vld [vmem:[#allocation2 + $0x18] sm:$0xf]
    %v56 = vld [vmem:[#allocation2 + $0x1c] sm:$0xf]
    %v57 = vld [vmem:[#allocation2 + $0x20] sm:$0xf]
    %v58 = vld [vmem:[#allocation2 + $0x24] sm:$0xf]
    %v59 = vld [vmem:[#allocation2 + $0x28] sm:$0xf]
    %v60 = vld [vmem:[#allocation2 + $0x2c] sm:$0xf]
    %v61 = vld [vmem:[#allocation2 + $0x30] sm:$0xf]
    %v62 = vld [vmem:[#allocation2 + $0x34] sm:$0xf]
    %v63 = vld [vmem:[#allocation2 + $0x38] sm:$0xf]
    %v64 = vld [vmem:[#allocation2 + $0x3c] sm:$0xf]
    %v65 = vld [vmem:[#allocation2 + $0x40] sm:$0xf]
    %v66 = vld [vmem:[#allocation2 + $0x44] sm:$0xf]
    %v67 = vld [vmem:[#allocation2 + $0x48] sm:$0xf]
    %v68 = vld [vmem:[#allocation2 + $0x4c] sm:$0xf]
    %v69 = vld [vmem:[#allocation2 + $0x50] sm:$0xf]
    %v70 = vld [vmem:[#allocation2 + $0x54] sm:$0xf]
    %v71 = vld [vmem:[#allocation2 + $0x58] sm:$0xf]
    %v72 = vld [vmem:[#allocation2 + $0x5c] sm:$0xf]
    %v73 = vld [vmem:[#allocation2 + $0x60] sm:$0xf]
    %v74 = vld [vmem:[#allocation2 + $0x64] sm:$0xf]
    %v75 = vld [vmem:[#allocation2 + $0x68] sm:$0xf]
    %v76 = vld [vmem:[#allocation2 + $0x6c] sm:$0xf]
    %v77 = vld [vmem:[#allocation2 + $0x70] sm:$0xf]
    %v78 = vld [vmem:[#allocation2 + $0x74] sm:$0xf]
    %v79 = vld [vmem:[#allocation2 + $0x78] sm:$0xf]
    %v80 = vld [vmem:[#allocation2 + $0x7c] sm:$0xf]
    %v81 = vld [vmem:[#allocation2 + $0x80] sm:$0xf]
    %v82 = vld [vmem:[#allocation2 + $0x84] sm:$0xf]
    %v83 = vld [vmem:[#allocation2 + $0x88] sm:$0xf]
    %v84 = vld [vmem:[#allocation2 + $0x8c] sm:$0xf]
    %v85 = vld [vmem:[#allocation2 + $0x90] sm:$0xf]
    %v86 = vld [vmem:[#allocation2 + $0x94] sm:$0xf]
    %v87 = vld [vmem:[#allocation2 + $0x98] sm:$0xf]
    %v88 = vld [vmem:[#allocation2 + $0x9c] sm:$0xf]
    %v89 = vld [vmem:[#allocation2 + $0xa0] sm:$0xf]
    %v90 = vld [vmem:[#allocation2 + $0xa4] sm:$0xf]
    %v91 = vld [vmem:[#allocation2 + $0xa8] sm:$0xf]
    %v92 = vld [vmem:[#allocation2 + $0xac] sm:$0xf]
    %v93 = vld [vmem:[#allocation2 + $0xb0] sm:$0xf]
    %v94 = vld [vmem:[#allocation2 + $0xb4] sm:$0xf]
    %v95 = vld [vmem:[#allocation2 + $0xb8] sm:$0xf]
    %v96 = vld [vmem:[#allocation2 + $0xbc] sm:$0xf]
    %v97 = vld [vmem:[#allocation2 + $0xc0] sm:$0xf]
    %v98 = vld [vmem:[#allocation2 + $0xc4] sm:$0xf]
    %v99 = vld [vmem:[#allocation2 + $0xc8] sm:$0xf]
    %v100 = vld [vmem:[#allocation2 + $0xcc] sm:$0xf]
    %v101 = vld [vmem:[#allocation2 + $0xd0] sm:$0xf]
    %v102 = vld [vmem:[#allocation2 + $0xd4] sm:$0xf]
    %v103 = vld [vmem:[#allocation2 + $0xd8] sm:$0xf]
    %v104 = vld [vmem:[#allocation2 + $0xdc] sm:$0xf]
    %v105 = vld [vmem:[#allocation2 + $0xe0] sm:$0xf]
    %v106 = vld [vmem:[#allocation2 + $0xe4] sm:$0xf]
    %v107 = vld [vmem:[#allocation2 + $0xe8] sm:$0xf]
    %v108 = vld [vmem:[#allocation2 + $0xec] sm:$0xf]
    %v109 = vld [vmem:[#allocation2 + $0xf0] sm:$0xf]
    %v110 = vld [vmem:[#allocation2 + $0xf4] sm:$0xf]
    %v111 = vld [vmem:[#allocation2 + $0xf8] sm:$0xf]
    %v112 = vld [vmem:[#allocation2 + $0xfc] sm:$0xf]
    %v113 = vld [vmem:[#allocation2 + $0x100] sm:$0xf]
    %v114 = vld [vmem:[#allocation2 + $0x104] sm:$0xf]
    %v115 = vld [vmem:[#allocation2 + $0x108] sm:$0xf]
    %v116 = vld [vmem:[#allocation2 + $0x10c] sm:$0xf]
    %v117 = vld [vmem:[#allocation2 + $0x110] sm:$0xf]
    %v118 = vld [vmem:[#allocation2 + $0x114] sm:$0xf]
    %v119 = vld [vmem:[#allocation2 + $0x118] sm:$0xf]
    %v120 = vld [vmem:[#allocation2 + $0x11c] sm:$0xf]
    %v121 = vld [vmem:[#allocation2 + $0x120] sm:$0xf]
    %v122 = vld [vmem:[#allocation2 + $0x124] sm:$0xf]
    %v123 = vld [vmem:[#allocation2 + $0x128] sm:$0xf]
    %v124 = vld [vmem:[#allocation2 + $0x12c] sm:$0xf]
    %v125 = vld [vmem:[#allocation2 + $0x130] sm:$0xf]
    %v126 = vld [vmem:[#allocation2 + $0x134] sm:$0xf]
    %v127 = vld [vmem:[#allocation2 + $0x138] sm:$0xf]
    %v128 = vld [vmem:[#allocation2 + $0x13c] sm:$0xf]
    %v129 = vld [vmem:[#allocation2 + $0x140] sm:$0xf]
    %v130 = vld [vmem:[#allocation2 + $0x144] sm:$0xf]
    %v131 = vld [vmem:[#allocation2 + $0x148] sm:$0xf]
    %v132 = vld [vmem:[#allocation2 + $0x14c] sm:$0xf]
    %v133 = vld [vmem:[#allocation2 + $0x150] sm:$0xf]
    %v134 = vld [vmem:[#allocation2 + $0x154] sm:$0xf]
    %v135 = vld [vmem:[#allocation2 + $0x158] sm:$0xf]
    %v136 = vld [vmem:[#allocation2 + $0x15c] sm:$0xf]
    %v137 = vld [vmem:[#allocation2 + $0x160] sm:$0xf]
    %v138 = vld [vmem:[#allocation2 + $0x164] sm:$0xf]
    %v139 = vld [vmem:[#allocation2 + $0x168] sm:$0xf]
    %v140 = vld [vmem:[#allocation2 + $0x16c] sm:$0xf]
    %v141 = vld [vmem:[#allocation2 + $0x170] sm:$0xf]
    %v142 = vld [vmem:[#allocation2 + $0x174] sm:$0xf]
    %v143 = vld [vmem:[#allocation2 + $0x178] sm:$0xf]
    %v144 = vld [vmem:[#allocation2 + $0x17c] sm:$0xf]
    %v145 = vld [vmem:[#allocation2 + $0x180] sm:$0xf]
    %v146 = vld [vmem:[#allocation2 + $0x184] sm:$0xf]
    %v147 = vld [vmem:[#allocation2 + $0x188] sm:$0xf]
    %v148 = vld [vmem:[#allocation2 + $0x18c] sm:$0xf]
    %v149 = vld [vmem:[#allocation2 + $0x190] sm:$0xf]
    %v150 = vld [vmem:[#allocation2 + $0x194] sm:$0xf]
    %v151 = vld [vmem:[#allocation2 + $0x198] sm:$0xf]
    %v152 = vld [vmem:[#allocation2 + $0x19c] sm:$0xf]
    %v153 = vld [vmem:[#allocation2 + $0x1a0] sm:$0xf]
    %v154 = vld [vmem:[#allocation2 + $0x1a4] sm:$0xf]
    %v155 = vld [vmem:[#allocation2 + $0x1a8] sm:$0xf]
    %v156 = vld [vmem:[#allocation2 + $0x1ac] sm:$0xf]
    %v157 = vld [vmem:[#allocation2 + $0x1b0] sm:$0xf]
    %v158 = vld [vmem:[#allocation2 + $0x1b4] sm:$0xf]
    %v159 = vld [vmem:[#allocation2 + $0x1b8] sm:$0xf]
    %v160 = vld [vmem:[#allocation2 + $0x1bc] sm:$0xf]
    %v161 = vld [vmem:[#allocation2 + $0x1c0] sm:$0xf]
    %v162 = vld [vmem:[#allocation2 + $0x1c4] sm:$0xf]
    %v163 = vld [vmem:[#allocation2 + $0x1c8] sm:$0xf]
    %v164 = vld [vmem:[#allocation2 + $0x1cc] sm:$0xf]
    %v165 = vld [vmem:[#allocation2 + $0x1d0] sm:$0xf]
    %v166 = vld [vmem:[#allocation2 + $0x1d4] sm:$0xf]
    %v167 = vld [vmem:[#allocation2 + $0x1d8] sm:$0xf]
    %v168 = vld [vmem:[#allocation2 + $0x1dc] sm:$0xf]
    %v169 = vld [vmem:[#allocation2 + $0x1e0] sm:$0xf]
    %v170 = vld [vmem:[#allocation2 + $0x1e4] sm:$0xf]
    %v171 = vld [vmem:[#allocation2 + $0x1e8] sm:$0xf]
    %v172 = vld [vmem:[#allocation2 + $0x1ec] sm:$0xf]
    %v173 = vld [vmem:[#allocation2 + $0x1f0] sm:$0xf]
    %v174 = vld [vmem:[#allocation2 + $0x1f4] sm:$0xf]
    %v175 = vld [vmem:[#allocation2 + $0x1f8] sm:$0xf]
    %v176 = vld [vmem:[#allocation2 + $0x1fc] sm:$0xf]
    %v178 = vcombine.high %v48, %v48
    %v180 = vunpack.c.l.s4 1966171168
    %v181 = vunpack.c.0.s8 %v180
    %v182 = vlaneseq
    %v183 = vshrl.u32 %v182, 7
    %v184 = vsub.s32 %v181, %v183
    %v185 = vrot.slane %v48, %v184
    %v187 = vunpack.c.l.s4 1966171168
    %v188 = vunpack.c.0.s8 %v187
    %v189 = vlaneseq
    %v190 = vshrl.u32 %v189, 7
    %v191 = vsub.s32 %v188, %v190
    %v192 = vrot.slane %v178, %v191
    %v193 = vcombine.high %v185, %v185
    %v194 = vcombine.high %v192, %v192
    %v196 = vunpack.c.l.s4 1966171168
    %v197 = vunpack.c.0.s8 %v196
    %v198 = vlaneseq
    %v199 = vshrl.u32 %v198, 7
    %v200 = vsub.s32 %v197, %v199
    %v201 = vrot.slane %v185, %v200
    %v203 = vunpack.c.l.s4 1966171168
    %v204 = vunpack.c.0.s8 %v203
    %v205 = vlaneseq
    %v206 = vshrl.u32 %v205, 7
    %v207 = vsub.s32 %v204, %v206
    %v208 = vrot.slane %v192, %v207
    %v210 = vunpack.c.l.s4 1966171168
    %v211 = vunpack.c.0.s8 %v210
    %v212 = vlaneseq
    %v213 = vshrl.u32 %v212, 7
    %v214 = vsub.s32 %v211, %v213
    %v215 = vrot.slane %v193, %v214
    %v217 = vunpack.c.l.s4 1966171168
    %v218 = vunpack.c.0.s8 %v217
    %v219 = vlaneseq
    %v220 = vshrl.u32 %v219, 7
    %v221 = vsub.s32 %v218, %v220
    %v222 = vrot.slane %v194, %v221
    %v223 = vcombine.high %v201, %v201
    %v224 = vcombine.high %v208, %v208
    %v225 = vcombine.high %v215, %v215
    %v226 = vcombine.high %v222, %v222
    %v363 = vunpack.c.l.b16 %v49
    %v364 = vunpack.c.l.b16 %v50
    %v365 = vunpack.c.l.b16 %v51
    %v366 = vunpack.c.l.b16 %v52
    %v367 = vunpack.c.l.b16 %v53
    %v368 = vunpack.c.l.b16 %v54
    %v369 = vunpack.c.l.b16 %v55
    %v370 = vunpack.c.l.b16 %v56
    %v371 = vunpack.c.l.b16 %v57
    %v372 = vunpack.c.l.b16 %v58
    %v373 = vunpack.c.l.b16 %v59
    %v374 = vunpack.c.l.b16 %v60
    %v375 = vunpack.c.l.b16 %v61
    %v376 = vunpack.c.l.b16 %v62
    %v377 = vunpack.c.l.b16 %v63
    %v378 = vunpack.c.l.b16 %v64
    %v379 = vunpack.c.l.b16 %v65
    %v380 = vunpack.c.l.b16 %v66
    %v381 = vunpack.c.l.b16 %v67
    %v382 = vunpack.c.l.b16 %v68
    %v383 = vunpack.c.l.b16 %v69
    %v384 = vunpack.c.l.b16 %v70
    %v385 = vunpack.c.l.b16 %v71
    %v386 = vunpack.c.l.b16 %v72
    %v387 = vunpack.c.l.b16 %v73
    %v388 = vunpack.c.l.b16 %v74
    %v389 = vunpack.c.l.b16 %v75
    %v390 = vunpack.c.l.b16 %v76
    %v391 = vunpack.c.l.b16 %v77
    %v392 = vunpack.c.l.b16 %v78
    %v393 = vunpack.c.l.b16 %v79
    %v394 = vunpack.c.l.b16 %v80
    %v395 = vunpack.c.l.b16 %v81
    %v396 = vunpack.c.l.b16 %v82
    %v397 = vunpack.c.l.b16 %v83
    %v398 = vunpack.c.l.b16 %v84
    %v399 = vunpack.c.l.b16 %v85
    %v400 = vunpack.c.l.b16 %v86
    %v401 = vunpack.c.l.b16 %v87
    %v402 = vunpack.c.l.b16 %v88
    %v403 = vunpack.c.l.b16 %v89
    %v404 = vunpack.c.l.b16 %v90
    %v405 = vunpack.c.l.b16 %v91
    %v406 = vunpack.c.l.b16 %v92
    %v407 = vunpack.c.l.b16 %v93
    %v408 = vunpack.c.l.b16 %v94
    %v409 = vunpack.c.l.b16 %v95
    %v410 = vunpack.c.l.b16 %v96
    %v411 = vunpack.c.l.b16 %v97
    %v412 = vunpack.c.l.b16 %v98
    %v413 = vunpack.c.l.b16 %v99
    %v414 = vunpack.c.l.b16 %v100
    %v415 = vunpack.c.l.b16 %v101
    %v416 = vunpack.c.l.b16 %v102
    %v417 = vunpack.c.l.b16 %v103
    %v418 = vunpack.c.l.b16 %v104
    %v419 = vunpack.c.l.b16 %v105
    %v420 = vunpack.c.l.b16 %v106
    %v421 = vunpack.c.l.b16 %v107
    %v422 = vunpack.c.l.b16 %v108
    %v423 = vunpack.c.l.b16 %v109
    %v424 = vunpack.c.l.b16 %v110
    %v425 = vunpack.c.l.b16 %v111
    %v426 = vunpack.c.l.b16 %v112
    %v427 = vunpack.c.l.b16 %v113
    %v428 = vunpack.c.l.b16 %v114
    %v429 = vunpack.c.l.b16 %v115
    %v430 = vunpack.c.l.b16 %v116
    %v431 = vunpack.c.l.b16 %v117
    %v432 = vunpack.c.l.b16 %v118
    %v433 = vunpack.c.l.b16 %v119
    %v434 = vunpack.c.l.b16 %v120
    %v435 = vunpack.c.l.b16 %v121
    %v436 = vunpack.c.l.b16 %v122
    %v437 = vunpack.c.l.b16 %v123
    %v438 = vunpack.c.l.b16 %v124
    %v439 = vunpack.c.l.b16 %v125
    %v440 = vunpack.c.l.b16 %v126
    %v441 = vunpack.c.l.b16 %v127
    %v442 = vunpack.c.l.b16 %v128
    %v443 = vunpack.c.l.b16 %v129
    %v444 = vunpack.c.l.b16 %v130
    %v445 = vunpack.c.l.b16 %v131
    %v446 = vunpack.c.l.b16 %v132
    %v447 = vunpack.c.l.b16 %v133
    %v448 = vunpack.c.l.b16 %v134
    %v449 = vunpack.c.l.b16 %v135
    %v450 = vunpack.c.l.b16 %v136
    %v451 = vunpack.c.l.b16 %v137
    %v452 = vunpack.c.l.b16 %v138
    %v453 = vunpack.c.l.b16 %v139
    %v454 = vunpack.c.l.b16 %v140
    %v455 = vunpack.c.l.b16 %v141
    %v456 = vunpack.c.l.b16 %v142
    %v457 = vunpack.c.l.b16 %v143
    %v458 = vunpack.c.l.b16 %v144
    %v459 = vunpack.c.l.b16 %v145
    %v460 = vunpack.c.l.b16 %v146
    %v461 = vunpack.c.l.b16 %v147
    %v462 = vunpack.c.l.b16 %v148
    %v463 = vunpack.c.l.b16 %v149
    %v464 = vunpack.c.l.b16 %v150
    %v465 = vunpack.c.l.b16 %v151
    %v466 = vunpack.c.l.b16 %v152
    %v467 = vunpack.c.l.b16 %v153
    %v468 = vunpack.c.l.b16 %v154
    %v469 = vunpack.c.l.b16 %v155
    %v470 = vunpack.c.l.b16 %v156
    %v471 = vunpack.c.l.b16 %v157
    %v472 = vunpack.c.l.b16 %v158
    %v473 = vunpack.c.l.b16 %v159
    %v474 = vunpack.c.l.b16 %v160
    %v475 = vunpack.c.l.b16 %v161
    %v476 = vunpack.c.l.b16 %v162
    %v477 = vunpack.c.l.b16 %v163
    %v478 = vunpack.c.l.b16 %v164
    %v479 = vunpack.c.l.b16 %v165
    %v480 = vunpack.c.l.b16 %v166
    %v481 = vunpack.c.l.b16 %v167
    %v482 = vunpack.c.l.b16 %v168
    %v483 = vunpack.c.l.b16 %v169
    %v484 = vunpack.c.l.b16 %v170
    %v485 = vunpack.c.l.b16 %v171
    %v486 = vunpack.c.l.b16 %v172
    %v487 = vunpack.c.l.b16 %v173
    %v488 = vunpack.c.l.b16 %v174
    %v489 = vunpack.c.l.b16 %v175
    %v490 = vunpack.c.l.b16 %v176
    %v491 = vpack.c.b16 %v364, %v363
    %v492 = vpack.c.b16 %v366, %v365
    %v493 = vpack.c.b16 %v368, %v367
    %v494 = vpack.c.b16 %v370, %v369
    %v495 = vpack.c.b16 %v372, %v371
    %v496 = vpack.c.b16 %v374, %v373
    %v497 = vpack.c.b16 %v376, %v375
    %v498 = vpack.c.b16 %v378, %v377
    %v499 = vpack.c.b16 %v380, %v379
    %v500 = vpack.c.b16 %v382, %v381
    %v501 = vpack.c.b16 %v384, %v383
    %v502 = vpack.c.b16 %v386, %v385
    %v503 = vpack.c.b16 %v388, %v387
    %v504 = vpack.c.b16 %v390, %v389
    %v505 = vpack.c.b16 %v392, %v391
    %v506 = vpack.c.b16 %v394, %v393
    %v507 = vpack.c.b16 %v396, %v395
    %v508 = vpack.c.b16 %v398, %v397
    %v509 = vpack.c.b16 %v400, %v399
    %v510 = vpack.c.b16 %v402, %v401
    %v511 = vpack.c.b16 %v404, %v403
    %v512 = vpack.c.b16 %v406, %v405
    %v513 = vpack.c.b16 %v408, %v407
    %v514 = vpack.c.b16 %v410, %v409
    %v515 = vpack.c.b16 %v412, %v411
    %v516 = vpack.c.b16 %v414, %v413
    %v517 = vpack.c.b16 %v416, %v415
    %v518 = vpack.c.b16 %v418, %v417
    %v519 = vpack.c.b16 %v420, %v419
    %v520 = vpack.c.b16 %v422, %v421
    %v521 = vpack.c.b16 %v424, %v423
    %v522 = vpack.c.b16 %v426, %v425
    %v523 = vpack.c.b16 %v428, %v427
    %v524 = vpack.c.b16 %v430, %v429
    %v525 = vpack.c.b16 %v432, %v431
    %v526 = vpack.c.b16 %v434, %v433
    %v527 = vpack.c.b16 %v436, %v435
    %v528 = vpack.c.b16 %v438, %v437
    %v529 = vpack.c.b16 %v440, %v439
    %v530 = vpack.c.b16 %v442, %v441
    %v531 = vpack.c.b16 %v444, %v443
    %v532 = vpack.c.b16 %v446, %v445
    %v533 = vpack.c.b16 %v448, %v447
    %v534 = vpack.c.b16 %v450, %v449
    %v535 = vpack.c.b16 %v452, %v451
    %v536 = vpack.c.b16 %v454, %v453
    %v537 = vpack.c.b16 %v456, %v455
    %v538 = vpack.c.b16 %v458, %v457
    %v539 = vpack.c.b16 %v460, %v459
    %v540 = vpack.c.b16 %v462, %v461
    %v541 = vpack.c.b16 %v464, %v463
    %v542 = vpack.c.b16 %v466, %v465
    %v543 = vpack.c.b16 %v468, %v467
    %v544 = vpack.c.b16 %v470, %v469
    %v545 = vpack.c.b16 %v472, %v471
    %v546 = vpack.c.b16 %v474, %v473
    %v547 = vpack.c.b16 %v476, %v475
    %v548 = vpack.c.b16 %v478, %v477
    %v549 = vpack.c.b16 %v480, %v479
    %v550 = vpack.c.b16 %v482, %v481
    %v551 = vpack.c.b16 %v484, %v483
    %v552 = vpack.c.b16 %v486, %v485
    %v553 = vpack.c.b16 %v488, %v487
    %v554 = vpack.c.b16 %v490, %v489
    %619 = vmatprep.subr.bf16.mxu0 0
    %620 = vmatpush1.bf16.msra.mxu0 %v491
    %621 = vmatprep.subr.bf16.mxu0 0
    %622 = vmatpush1.bf16.msra.mxu0 %v492
    %623 = vmatprep.subr.bf16.mxu0 0
    %624 = vmatpush1.bf16.msra.mxu0 %v493
    %625 = vmatprep.subr.bf16.mxu0 0
    %626 = vmatpush1.bf16.msra.mxu0 %v494
    %627 = vmatprep.subr.bf16.mxu0 0
    %628 = vmatpush1.bf16.msra.mxu0 %v495
    %629 = vmatprep.subr.bf16.mxu0 0
    %630 = vmatpush1.bf16.msra.mxu0 %v496
    %631 = vmatprep.subr.bf16.mxu0 0
    %632 = vmatpush1.bf16.msra.mxu0 %v497
    %633 = vmatprep.subr.bf16.mxu0 0
    %634 = vmatpush1.bf16.msra.mxu0 %v498
    %635 = vmatprep.subr.bf16.mxu0 0
    %636 = vmatpush1.bf16.msra.mxu0 %v499
    %637 = vmatprep.subr.bf16.mxu0 0
    %638 = vmatpush1.bf16.msra.mxu0 %v500
    %639 = vmatprep.subr.bf16.mxu0 0
    %640 = vmatpush1.bf16.msra.mxu0 %v501
    %641 = vmatprep.subr.bf16.mxu0 0
    %642 = vmatpush1.bf16.msra.mxu0 %v502
    %643 = vmatprep.subr.bf16.mxu0 0
    %644 = vmatpush1.bf16.msra.mxu0 %v503
    %645 = vmatprep.subr.bf16.mxu0 0
    %646 = vmatpush1.bf16.msra.mxu0 %v504
    %647 = vmatprep.subr.bf16.mxu0 0
    %648 = vmatpush1.bf16.msra.mxu0 %v505
    %649 = vmatprep.subr.bf16.mxu0 0
    %650 = vmatpush1.bf16.msra.mxu0 %v506
    %651 = vmatprep.mubr.bf16.mxu0 %v215
    %652 = vmatmul.mubr.bf16.gmra.mrb[0].mxu0 %v201
    %v653 = vpop.f32.mrb[0].mxu0
    %v654 = vadd.f32 0.0, %v653
    %v655 = vpop.f32.mrb[0].mxu0
    %v656 = vpop.f32.mrb[0].mxu0
    %v657 = vpop.f32.mrb[0].mxu0
    %658 = vdwg.mxu0
    %659 = vmatprep.subr.bf16.mxu0 0
    %660 = vmatpush1.bf16.msra.mxu0 %v507
    %661 = vmatprep.subr.bf16.mxu0 0
    %662 = vmatpush1.bf16.msra.mxu0 %v508
    %663 = vmatprep.subr.bf16.mxu0 0
    %664 = vmatpush1.bf16.msra.mxu0 %v509
    %665 = vmatprep.subr.bf16.mxu0 0
    %666 = vmatpush1.bf16.msra.mxu0 %v510
    %667 = vmatprep.subr.bf16.mxu0 0
    %668 = vmatpush1.bf16.msra.mxu0 %v511
    %669 = vmatprep.subr.bf16.mxu0 0
    %670 = vmatpush1.bf16.msra.mxu0 %v512
    %671 = vmatprep.subr.bf16.mxu0 0
    %672 = vmatpush1.bf16.msra.mxu0 %v513
    %673 = vmatprep.subr.bf16.mxu0 0
    %674 = vmatpush1.bf16.msra.mxu0 %v514
    %675 = vmatprep.subr.bf16.mxu0 0
    %676 = vmatpush1.bf16.msra.mxu0 %v515
    %677 = vmatprep.subr.bf16.mxu0 0
    %678 = vmatpush1.bf16.msra.mxu0 %v516
    %679 = vmatprep.subr.bf16.mxu0 0
    %680 = vmatpush1.bf16.msra.mxu0 %v517
    %681 = vmatprep.subr.bf16.mxu0 0
    %682 = vmatpush1.bf16.msra.mxu0 %v518
    %683 = vmatprep.subr.bf16.mxu0 0
    %684 = vmatpush1.bf16.msra.mxu0 %v519
    %685 = vmatprep.subr.bf16.mxu0 0
    %686 = vmatpush1.bf16.msra.mxu0 %v520
    %687 = vmatprep.subr.bf16.mxu0 0
    %688 = vmatpush1.bf16.msra.mxu0 %v521
    %689 = vmatprep.subr.bf16.mxu0 0
    %690 = vmatpush1.bf16.msra.mxu0 %v522
    %691 = vmatprep.mubr.bf16.mxu0 %v225
    %692 = vmatmul.mubr.bf16.gmra.mrb[0].mxu0 %v223
    %v693 = vpop.f32.mrb[0].mxu0
    %v694 = vadd.f32 %v654, %v693
    %v695 = vpop.f32.mrb[0].mxu0
    %v696 = vpop.f32.mrb[0].mxu0
    %v697 = vpop.f32.mrb[0].mxu0
    %698 = vdwg.mxu0
    %699 = vmatprep.subr.bf16.mxu0 0
    %700 = vmatpush1.bf16.msra.mxu0 %v523
    %701 = vmatprep.subr.bf16.mxu0 0
    %702 = vmatpush1.bf16.msra.mxu0 %v524
    %703 = vmatprep.subr.bf16.mxu0 0
    %704 = vmatpush1.bf16.msra.mxu0 %v525
    %705 = vmatprep.subr.bf16.mxu0 0
    %706 = vmatpush1.bf16.msra.mxu0 %v526
    %707 = vmatprep.subr.bf16.mxu0 0
    %708 = vmatpush1.bf16.msra.mxu0 %v527
    %709 = vmatprep.subr.bf16.mxu0 0
    %710 = vmatpush1.bf16.msra.mxu0 %v528
    %711 = vmatprep.subr.bf16.mxu0 0
    %712 = vmatpush1.bf16.msra.mxu0 %v529
    %713 = vmatprep.subr.bf16.mxu0 0
    %714 = vmatpush1.bf16.msra.mxu0 %v530
    %715 = vmatprep.subr.bf16.mxu0 0
    %716 = vmatpush1.bf16.msra.mxu0 %v531
    %717 = vmatprep.subr.bf16.mxu0 0
    %718 = vmatpush1.bf16.msra.mxu0 %v532
    %719 = vmatprep.subr.bf16.mxu0 0
    %720 = vmatpush1.bf16.msra.mxu0 %v533
    %721 = vmatprep.subr.bf16.mxu0 0
    %722 = vmatpush1.bf16.msra.mxu0 %v534
    %723 = vmatprep.subr.bf16.mxu0 0
    %724 = vmatpush1.bf16.msra.mxu0 %v535
    %725 = vmatprep.subr.bf16.mxu0 0
    %726 = vmatpush1.bf16.msra.mxu0 %v536
    %727 = vmatprep.subr.bf16.mxu0 0
    %728 = vmatpush1.bf16.msra.mxu0 %v537
    %729 = vmatprep.subr.bf16.mxu0 0
    %730 = vmatpush1.bf16.msra.mxu0 %v538
    %731 = vmatprep.mubr.bf16.mxu0 %v222
    %732 = vmatmul.mubr.bf16.gmra.mrb[0].mxu0 %v208
    %v733 = vpop.f32.mrb[0].mxu0
    %v734 = vadd.f32 %v694, %v733
    %v735 = vpop.f32.mrb[0].mxu0
    %v736 = vpop.f32.mrb[0].mxu0
    %v737 = vpop.f32.mrb[0].mxu0
    %738 = vdwg.mxu0
    %739 = vmatprep.subr.bf16.mxu0 0
    %740 = vmatpush1.bf16.msra.mxu0 %v539
    %741 = vmatprep.subr.bf16.mxu0 0
    %742 = vmatpush1.bf16.msra.mxu0 %v540
    %743 = vmatprep.subr.bf16.mxu0 0
    %744 = vmatpush1.bf16.msra.mxu0 %v541
    %745 = vmatprep.subr.bf16.mxu0 0
    %746 = vmatpush1.bf16.msra.mxu0 %v542
    %747 = vmatprep.subr.bf16.mxu0 0
    %748 = vmatpush1.bf16.msra.mxu0 %v543
    %749 = vmatprep.subr.bf16.mxu0 0
    %750 = vmatpush1.bf16.msra.mxu0 %v544
    %751 = vmatprep.subr.bf16.mxu0 0
    %752 = vmatpush1.bf16.msra.mxu0 %v545
    %753 = vmatprep.subr.bf16.mxu0 0
    %754 = vmatpush1.bf16.msra.mxu0 %v546
    %755 = vmatprep.subr.bf16.mxu0 0
    %756 = vmatpush1.bf16.msra.mxu0 %v547
    %757 = vmatprep.subr.bf16.mxu0 0
    %758 = vmatpush1.bf16.msra.mxu0 %v548
    %759 = vmatprep.subr.bf16.mxu0 0
    %760 = vmatpush1.bf16.msra.mxu0 %v549
    %761 = vmatprep.subr.bf16.mxu0 0
    %762 = vmatpush1.bf16.msra.mxu0 %v550
    %763 = vmatprep.subr.bf16.mxu0 0
    %764 = vmatpush1.bf16.msra.mxu0 %v551
    %765 = vmatprep.subr.bf16.mxu0 0
    %766 = vmatpush1.bf16.msra.mxu0 %v552
    %767 = vmatprep.subr.bf16.mxu0 0
    %768 = vmatpush1.bf16.msra.mxu0 %v553
    %769 = vmatprep.subr.bf16.mxu0 0
    %770 = vmatpush1.bf16.msra.mxu0 %v554
    %771 = vmatprep.mubr.bf16.mxu0 %v226
    %772 = vmatmul.mubr.bf16.gmra.mrb[0].mxu0 %v224
    %v773 = vpop.f32.mrb[0].mxu0
    %v774 = vadd.f32 %v734, %v773
    %v775 = vpop.f32.mrb[0].mxu0
    %v776 = vpop.f32.mrb[0].mxu0
    %v777 = vpop.f32.mrb[0].mxu0
    %778 = vdwg.mxu0
    %v779 = vmax.f32 %v774, 0.0
    %vm780 = vcmask 1041408
    %v781 = vsel %vm780, %v779, 0.0
    %v782 = vrot.slane %v781, 4
    %v783 = vadd.f32 %v781, %v782
    %v784 = vrot.slane %v783, 2
    %v785 = vadd.f32 %v783, %v784
    %v786 = vrot.slane %v785, 1
    %v787 = vadd.f32 %v785, %v786
    %v788 = vrcp.pop 2.0
    %v789 = vmul.f32 %v787, %v788
    %v790 = vsub.f32 %v779, %v789
    %v791 = vmul.f32 %v790, %v790
    %v792 = vsel %vm780, %v791, 0.0
    %v793 = vrot.slane %v792, 4
    %v794 = vadd.f32 %v792, %v793
    %v795 = vrot.slane %v794, 2
    %v796 = vadd.f32 %v794, %v795
    %v797 = vrot.slane %v796, 1
    %v798 = vadd.f32 %v796, %v797
    %v799 = vmul.f32 %v798, %v788
    %v800 = vadd.f32 %v799, 1e-05
    %v801 = vrsqrt.pop %v800
    %v802 = vld [vmem:[%s2] sm:$0x1]
    %v803 = vmul.f32 %v801, %v802
    %v804 = vlaneseq
    %v805 = vshrl.u32 %v804, 7
    %v806 = vsub.s32 0, %v805
    %v807 = vrot.slane %v803, %v806
    %v808 = vmul.f32 %v790, %v807
    %v809 = vld [vmem:[%s3] sm:$0x1]
    %v811 = vlaneseq
    %v812 = vshrl.u32 %v811, 7
    %v813 = vsub.s32 0, %v812
    %v814 = vrot.slane %v809, %v813
    %v816 = vadd.f32 %v808, %v814
    %v817 = vpack.c.bf16 %v816, %v816
    %v818 = vld [vmem:[%s4] sm:$0xf]
    %v819 = vld [vmem:[%s4 + $0x4] sm:$0xf]
    %v820 = vld [vmem:[%s4 + $0x8] sm:$0xf]
    %v821 = vld [vmem:[%s4 + $0xc] sm:$0xf]
    %v822 = vld [vmem:[%s4 + $0x10] sm:$0xf]
    %v823 = vld [vmem:[%s4 + $0x14] sm:$0xf]
    %v824 = vld [vmem:[%s4 + $0x18] sm:$0xf]
    %v825 = vld [vmem:[%s4 + $0x1c] sm:$0xf]
    %v826 = vld [vmem:[%s4 + $0x20] sm:$0xf]
    %v827 = vld [vmem:[%s4 + $0x24] sm:$0xf]
    %v828 = vld [vmem:[%s4 + $0x28] sm:$0xf]
    %v829 = vld [vmem:[%s4 + $0x2c] sm:$0xf]
    %v830 = vld [vmem:[%s4 + $0x30] sm:$0xf]
    %v831 = vld [vmem:[%s4 + $0x34] sm:$0xf]
    %v832 = vld [vmem:[%s4 + $0x38] sm:$0xf]
    %v833 = vld [vmem:[%s4 + $0x3c] sm:$0xf]
    %v850 = vunpack.c.l.b16 %v818
    %v851 = vunpack.c.l.b16 %v819
    %v852 = vunpack.c.l.b16 %v820
    %v853 = vunpack.c.l.b16 %v821
    %v854 = vunpack.c.l.b16 %v822
    %v855 = vunpack.c.l.b16 %v823
    %v856 = vunpack.c.l.b16 %v824
    %v857 = vunpack.c.l.b16 %v825
    %v858 = vunpack.c.l.b16 %v826
    %v859 = vunpack.c.l.b16 %v827
    %v860 = vunpack.c.l.b16 %v828
    %v861 = vunpack.c.l.b16 %v829
    %v862 = vunpack.c.l.b16 %v830
    %v863 = vunpack.c.l.b16 %v831
    %v864 = vunpack.c.l.b16 %v832
    %v865 = vunpack.c.l.b16 %v833
    %v866 = vpack.c.b16 %v851, %v850
    %v867 = vpack.c.b16 %v853, %v852
    %v868 = vpack.c.b16 %v855, %v854
    %v869 = vpack.c.b16 %v857, %v856
    %v870 = vpack.c.b16 %v859, %v858
    %v871 = vpack.c.b16 %v861, %v860
    %v872 = vpack.c.b16 %v863, %v862
    %v873 = vpack.c.b16 %v865, %v864
    %882 = vmatprep.subr.bf16.mxu0 0
    %883 = vmatpush1.bf16.msra.mxu0 %v866
    %884 = vmatprep.subr.bf16.mxu0 0
    %885 = vmatpush1.bf16.msra.mxu0 %v867
    %886 = vmatprep.subr.bf16.mxu0 0
    %887 = vmatpush1.bf16.msra.mxu0 %v868
    %888 = vmatprep.subr.bf16.mxu0 0
    %889 = vmatpush1.bf16.msra.mxu0 %v869
    %890 = vmatprep.subr.bf16.mxu0 0
    %891 = vmatpush1.bf16.msra.mxu0 %v870
    %892 = vmatprep.subr.bf16.mxu0 0
    %893 = vmatpush1.bf16.msra.mxu0 %v871
    %894 = vmatprep.subr.bf16.mxu0 0
    %895 = vmatpush1.bf16.msra.mxu0 %v872
    %896 = vmatprep.subr.bf16.mxu0 0
    %897 = vmatpush1.bf16.msra.mxu0 %v873
    %898 = vmatprep.subr.bf16.mxu0 0
    %899 = vmatpush1.bf16.msra.mxu0 0
    %900 = vmatprep.subr.bf16.mxu0 0
    %901 = vmatpush1.bf16.msra.mxu0 0
    %902 = vmatprep.subr.bf16.mxu0 0
    %903 = vmatpush1.bf16.msra.mxu0 0
    %904 = vmatprep.subr.bf16.mxu0 0
    %905 = vmatpush1.bf16.msra.mxu0 0
    %906 = vmatprep.subr.bf16.mxu0 0
    %907 = vmatpush1.bf16.msra.mxu0 0
    %908 = vmatprep.subr.bf16.mxu0 0
    %909 = vmatpush1.bf16.msra.mxu0 0
    %910 = vmatprep.subr.bf16.mxu0 0
    %911 = vmatpush1.bf16.msra.mxu0 0
    %912 = vmatprep.subr.bf16.mxu0 0
    %913 = vmatpush1.bf16.msra.mxu0 0
    %914 = vmatprep.mubr.bf16.mxu0 0
    %915 = vmatmul.mubr.bf16.gmra.mrb[0].mxu0 %v817
    %v916 = vpop.f32.mrb[0].mxu0
    %v917 = vadd.f32 0.0, %v916
    %v918 = vpop.f32.mrb[0].mxu0
    %v919 = vpop.f32.mrb[0].mxu0
    %v920 = vpop.f32.mrb[0].mxu0
    %921 = vdwg.mxu0
    %v922 = vmax.f32 %v917, 0.0
    %v923 = vsel %vm780, %v922, 0.0
    %v924 = vrot.slane %v923, 4
    %v925 = vadd.f32 %v923, %v924
    %v926 = vrot.slane %v925, 2
    %v927 = vadd.f32 %v925, %v926
    %v928 = vrot.slane %v927, 1
    %v929 = vadd.f32 %v927, %v928
    %v930 = vmul.f32 %v929, %v788
    %v931 = vsub.f32 %v922, %v930
    %v932 = vmul.f32 %v931, %v931
    %v933 = vsel %vm780, %v932, 0.0
    %v934 = vrot.slane %v933, 4
    %v935 = vadd.f32 %v933, %v934
    %v936 = vrot.slane %v935, 2
    %v937 = vadd.f32 %v935, %v936
    %v938 = vrot.slane %v937, 1
    %v939 = vadd.f32 %v937, %v938
    %v940 = vmul.f32 %v939, %v788
    %v941 = vadd.f32 %v940, 1e-05
    %v942 = vrsqrt.pop %v941
    %v943 = vld [vmem:[%s5] sm:$0x1]
    %v944 = vmul.f32 %v942, %v943
    %v945 = vlaneseq
    %v946 = vshrl.u32 %v945, 7
    %v947 = vsub.s32 0, %v946
    %v948 = vrot.slane %v944, %v947
    %v949 = vmul.f32 %v931, %v948
    %v950 = vld [vmem:[%s6] sm:$0x1]
    %v952 = vlaneseq
    %v953 = vshrl.u32 %v952, 7
    %v954 = vsub.s32 0, %v953
    %v955 = vrot.slane %v950, %v954
    %v957 = vadd.f32 %v949, %v955
    %v958 = vpack.c.bf16 %v957, %v957
    %v959 = vld [vmem:[%s7] sm:$0xf]
    %v960 = vld [vmem:[%s7 + $0x4] sm:$0xf]
    %v961 = vld [vmem:[%s7 + $0x8] sm:$0xf]
    %v962 = vld [vmem:[%s7 + $0xc] sm:$0xf]
    %v963 = vld [vmem:[%s7 + $0x10] sm:$0xf]
    %v964 = vld [vmem:[%s7 + $0x14] sm:$0xf]
    %v965 = vld [vmem:[%s7 + $0x18] sm:$0xf]
    %v966 = vld [vmem:[%s7 + $0x1c] sm:$0xf]
    %v967 = vld [vmem:[%s7 + $0x20] sm:$0xf]
    %v968 = vld [vmem:[%s7 + $0x24] sm:$0xf]
    %v969 = vld [vmem:[%s7 + $0x28] sm:$0xf]
    %v970 = vld [vmem:[%s7 + $0x2c] sm:$0xf]
    %v971 = vld [vmem:[%s7 + $0x30] sm:$0xf]
    %v972 = vld [vmem:[%s7 + $0x34] sm:$0xf]
    %v973 = vld [vmem:[%s7 + $0x38] sm:$0xf]
    %v974 = vld [vmem:[%s7 + $0x3c] sm:$0xf]
    %v975 = vld [vmem:[%s8] sm:$0x1]
    %v977 = vlaneseq
    %v978 = vshrl.u32 %v977, 7
    %v979 = vsub.s32 0, %v978
    %v980 = vrot.slane %v975, %v979
    %v998 = vunpack.c.l.b16 %v959
    %v999 = vunpack.c.l.b16 %v960
    %v1000 = vunpack.c.l.b16 %v961
    %v1001 = vunpack.c.l.b16 %v962
    %v1002 = vunpack.c.l.b16 %v963
    %v1003 = vunpack.c.l.b16 %v964
    %v1004 = vunpack.c.l.b16 %v965
    %v1005 = vunpack.c.l.b16 %v966
    %v1006 = vunpack.c.l.b16 %v967
    %v1007 = vunpack.c.l.b16 %v968
    %v1008 = vunpack.c.l.b16 %v969
    %v1009 = vunpack.c.l.b16 %v970
    %v1010 = vunpack.c.l.b16 %v971
    %v1011 = vunpack.c.l.b16 %v972
    %v1012 = vunpack.c.l.b16 %v973
    %v1013 = vunpack.c.l.b16 %v974
    %v1014 = vpack.c.b16 %v999, %v998
    %v1015 = vpack.c.b16 %v1001, %v1000
    %v1016 = vpack.c.b16 %v1003, %v1002
    %v1017 = vpack.c.b16 %v1005, %v1004
    %v1018 = vpack.c.b16 %v1007, %v1006
    %v1019 = vpack.c.b16 %v1009, %v1008
    %v1020 = vpack.c.b16 %v1011, %v1010
    %v1021 = vpack.c.b16 %v1013, %v1012
    %1030 = vmatprep.subr.bf16.mxu0 0
    %1031 = vmatpush1.bf16.msra.mxu0 %v1014
    %1032 = vmatprep.subr.bf16.mxu0 0
    %1033 = vmatpush1.bf16.msra.mxu0 %v1015
    %1034 = vmatprep.subr.bf16.mxu0 0
    %1035 = vmatpush1.bf16.msra.mxu0 %v1016
    %1036 = vmatprep.subr.bf16.mxu0 0
    %1037 = vmatpush1.bf16.msra.mxu0 %v1017
    %1038 = vmatprep.subr.bf16.mxu0 0
    %1039 = vmatpush1.bf16.msra.mxu0 %v1018
    %1040 = vmatprep.subr.bf16.mxu0 0
    %1041 = vmatpush1.bf16.msra.mxu0 %v1019
    %1042 = vmatprep.subr.bf16.mxu0 0
    %1043 = vmatpush1.bf16.msra.mxu0 %v1020
    %1044 = vmatprep.subr.bf16.mxu0 0
    %1045 = vmatpush1.bf16.msra.mxu0 %v1021
    %1046 = vmatprep.subr.bf16.mxu0 0
    %1047 = vmatpush1.bf16.msra.mxu0 0
    %1048 = vmatprep.subr.bf16.mxu0 0
    %1049 = vmatpush1.bf16.msra.mxu0 0
    %1050 = vmatprep.subr.bf16.mxu0 0
    %1051 = vmatpush1.bf16.msra.mxu0 0
    %1052 = vmatprep.subr.bf16.mxu0 0
    %1053 = vmatpush1.bf16.msra.mxu0 0
    %1054 = vmatprep.subr.bf16.mxu0 0
    %1055 = vmatpush1.bf16.msra.mxu0 0
    %1056 = vmatprep.subr.bf16.mxu0 0
    %1057 = vmatpush1.bf16.msra.mxu0 0
    %1058 = vmatprep.subr.bf16.mxu0 0
    %1059 = vmatpush1.bf16.msra.mxu0 0
    %1060 = vmatprep.subr.bf16.mxu0 0
    %1061 = vmatpush1.bf16.msra.mxu0 0
    %1062 = vmatprep.mubr.bf16.mxu0 0
    %1063 = vmatmul.mubr.bf16.gmra.mrb[0].mxu0 %v958
    %v1064 = vpop.f32.mrb[0].mxu0
    %v1065 = vadd.f32 %v980, %v1064
    %v1066 = vpop.f32.mrb[0].mxu0
    %v1067 = vpop.f32.mrb[0].mxu0
    %v1068 = vpop.f32.mrb[0].mxu0
    %1069 = vdwg.mxu0
    %1070 = vst [vmem:[#allocation5] sm:$0x3] %v1065
    // Predicated region
    $region42: #{_mlp_forward_padded.1} parent=1 // pred_check
      _
    $region43: #{_mlp_forward_padded.1} parent=1 // pred_check_branch
      %1072 = sbr.rel (0) target = $region45
    $region44: #{_mlp_forward_padded.1} parent=1 // pred_region
      %s1074 = ssub.s32 32, 32
      %1075 = vsyncadd [#allocation4], %s1074
      %s1077 = sshll.u32 [#allocation5], 4
      %s1078 = int_to_ptr.vmem [resolvable:$true] %s1077
      %1080 = dma.vmem_to_hbm [thread:$0]  %s1078, 32, %s9, [#allocation4]
    $region45: #{_mlp_forward_padded.1} parent=1 // pred_fallthru
      _
    // Predicated region
    $region46: #{_mlp_forward_padded.1} parent=1 // pred_check
      _
    $region47: #{_mlp_forward_padded.1} parent=1 // pred_check_branch
      %1082 = sbr.rel (0) target = $region49
    $region48: #{_mlp_forward_padded.1} parent=1 // pred_region
      %1083 = dma.done [#allocation4], 32
    $region49: #{_mlp_forward_padded.1} parent=1 // pred_fallthru
      _
    %1084 = vsyncpa [#allocation3], 1
    %1085 = vsyncpa [#allocation4], 1

</llo_original>
